<compile_context>
chip_gen: v5e
topology: v5e:2x2
jax: 0.10.0
libtpu: 0.0.40
codegen_flags: <defaults>
</compile_context>

<pallas_src>
import functools
import math

import numpy as np
import jax
import jax.numpy as jnp
from jax import lax
from jax.experimental import pallas as pl
from jax.experimental.pallas import tpu as pltpu

EPS = 1e-6
NEG_INF = -1e30          # additive bias for masked attention positions
MATMUL_DTYPE = jnp.bfloat16   # MXU input dtype for dense projections (f32 accum)


# ------------------------------ tiling helpers --------------------------------
def _pick_row_tile(L, target=512):
    """Largest row tile <= target that divides L (multiple of 8 if possible)."""
    if L <= target:
        return L
    tm = target - (target % 8)
    while tm >= 8:
        if L % tm == 0:
            return tm
        tm -= 8
    return L


def _pick_window_block(n_windows, target=64):
    wb = min(n_windows, target)
    while n_windows % wb:
        wb -= 1
    return wb


# --------------------- K1: AdaRMSNorm + qkv projection ------------------------
def _norm_matmul_kernel(x_ref, scale_ref, w_ref, o_ref):
    x = x_ref[0]                                   # (TM, D) f32
    sc = scale_ref[0]                              # (1, D)  f32, broadcasts over TM
    mean_sq = jnp.mean(x * x, axis=-1, keepdims=True)
    xn = (x * (sc * lax.rsqrt(mean_sq + EPS))).astype(w_ref.dtype)
    o_ref[0] = lax.dot_general(xn, w_ref[...], (((1,), (1,)), ((), ())),
                               preferred_element_type=jnp.float32
                               ).astype(o_ref.dtype)


def norm_matmul(x, scale, w):
    """rms_norm(x, scale) @ w.T  (w stored torch-Linear style: (out, in))."""
    n, L, D = x.shape
    dout = w.shape[0]
    tm = _pick_row_tile(L)
    return pl.pallas_call(
        _norm_matmul_kernel,
        out_shape=jax.ShapeDtypeStruct((n, L, dout), x.dtype),
        grid=(n, L // tm),
        in_specs=[pl.BlockSpec((1, tm, D), lambda i, j: (i, j, 0)),
                  pl.BlockSpec((1, 1, D), lambda i, j: (i, 0, 0)),
                  pl.BlockSpec((dout, D), lambda i, j: (0, 0))],
        out_specs=pl.BlockSpec((1, tm, dout), lambda i, j: (i, j, 0)),
        compiler_params=pltpu.CompilerParams(
            dimension_semantics=("parallel", "parallel")),
    )(x, scale, w.astype(MATMUL_DTYPE))


# ----- K3: cosine-sim scale + axial RoPE + shifted-window attention (fused) ----
def _window_attn_kernel(scale_ref, q_ref, k_ref, v_ref, cos_ref, sin_ref,
                        bias_ref, o_ref, *, n_heads, dt):
    # grid = (n * n_heads, window_blocks); one (batch, head) per program_id(0).
    head = pl.program_id(0) % n_heads
    sqrt_s = scale_ref[head]                       # scalar from SMEM (precomputed sqrt)

    q = q_ref[0].astype(jnp.float32)               # (Wb, S, e)
    k = k_ref[0].astype(jnp.float32)
    v = v_ref[0].astype(jnp.float32)
    cos = cos_ref[0]                               # (Wb, S, dt)
    sin = sin_ref[0]
    bias = bias_ref[...]                           # (Wb, S, S) static window pattern

    # scale_for_cosine_sim (sum of squares over d_head, eps=1e-6)
    q = q * (sqrt_s * lax.rsqrt(jnp.sum(q * q, axis=-1, keepdims=True) + EPS))
    k = k * (sqrt_s * lax.rsqrt(jnp.sum(k * k, axis=-1, keepdims=True) + EPS))

    # axial RoPE on the first 2*dt channels of each head
    def rope(x):
        x1 = x[..., :dt]
        x2 = x[..., dt:2 * dt]
        rest = x[..., 2 * dt:]
        return jnp.concatenate(
            [x1 * cos - x2 * sin, x2 * cos + x1 * sin, rest], axis=-1)

    q = rope(q)
    k = rope(k)

    # batched attention over Wb windows, SDPA scale = 1.0 as in the module
    s = lax.dot_general(q, k, (((2,), (2,)), ((0,), (0,))),
                        preferred_element_type=jnp.float32) + bias
    m = jnp.max(s, axis=-1, keepdims=True)
    p = jnp.exp(s - m)
    denom = jnp.sum(p, axis=-1, keepdims=True)
    o = lax.dot_general(p, v, (((2,), (1,)), ((0,), (0,))),
                        preferred_element_type=jnp.float32)
    o_ref[0] = (o / denom).astype(o_ref.dtype)


def window_attention(sqrt_scale, qw, kw, vw, cosw, sinw, bias, *, n_heads, dt):
    G, nW, S, e = qw.shape                         # G = n * n_heads
    wb = _pick_window_block(nW)
    qspec = pl.BlockSpec((1, wb, S, e), lambda g, b: (g, b, 0, 0))
    tspec = pl.BlockSpec((1, wb, S, dt), lambda g, b: (g, b, 0, 0))
    bspec = pl.BlockSpec((wb, S, S), lambda g, b: (b, 0, 0))   # shared across G
    return pl.pallas_call(
        functools.partial(_window_attn_kernel, n_heads=n_heads, dt=dt),
        out_shape=jax.ShapeDtypeStruct(qw.shape, qw.dtype),
        grid=(G, nW // wb),
        in_specs=[pl.BlockSpec(memory_space=pltpu.MemorySpace.SMEM),
                  qspec, qspec, qspec, tspec, tspec, bspec],
        out_specs=qspec,
        compiler_params=pltpu.CompilerParams(
            dimension_semantics=("parallel", "parallel")),
    )(sqrt_scale, qw, kw, vw, cosw, sinw, bias)


# -------------------- K4: output projection + residual ------------------------
def _matmul_residual_kernel(x_ref, skip_ref, w_ref, o_ref):
    xb = x_ref[0].astype(w_ref.dtype)
    y = lax.dot_general(xb, w_ref[...], (((1,), (1,)), ((), ())),
                        preferred_element_type=jnp.float32)
    o_ref[0] = (y + skip_ref[0]).astype(o_ref.dtype)


def matmul_residual(x, skip, w):
    n, L, D = x.shape
    dout = w.shape[0]
    tm = _pick_row_tile(L)
    return pl.pallas_call(
        _matmul_residual_kernel,
        out_shape=jax.ShapeDtypeStruct((n, L, dout), x.dtype),
        grid=(n, L // tm),
        in_specs=[pl.BlockSpec((1, tm, D), lambda i, j: (i, j, 0)),
                  pl.BlockSpec((1, tm, dout), lambda i, j: (i, j, 0)),
                  pl.BlockSpec((dout, D), lambda i, j: (0, 0))],
        out_specs=pl.BlockSpec((1, tm, dout), lambda i, j: (i, j, 0)),
        compiler_params=pltpu.CompilerParams(
            dimension_semantics=("parallel", "parallel")),
    )(x, skip, w.astype(MATMUL_DTYPE))


# ------------------- K5: fused FeedForward (GEGLU) block -----------------------
def _erf(x):
    # float32-accurate erf (Abramowitz & Stegun 7.1.26, |err| < 1.5e-7).
    # Torch's exact GELU uses erf; erf_p may not lower in Mosaic -> hand-rolled.
    p = 0.3275911
    a1, a2, a3, a4, a5 = (0.254829592, -0.284496736, 1.421413741,
                          -1.453152027, 1.061405429)
    sgn = jnp.where(x >= 0, 1.0, -1.0)
    ax = jnp.abs(x)
    t = 1.0 / (1.0 + p * ax)
    poly = ((((a5 * t + a4) * t + a3) * t + a2) * t + a1) * t
    return sgn * (1.0 - poly * jnp.exp(-ax * ax))


def _gelu_exact(x):
    return 0.5 * x * (1.0 + _erf(x * 0.7071067811865476))


def _ff_kernel(x_ref, scale_ref, wa_ref, wg_ref, wd_ref, o_ref):
    x = x_ref[0]                                   # (TM, D)
    sc = scale_ref[0]                              # (1, D)
    mean_sq = jnp.mean(x * x, axis=-1, keepdims=True)
    xn = x * (sc * lax.rsqrt(mean_sq + EPS))
    xb = xn.astype(wa_ref.dtype)
    a = lax.dot_general(xb, wa_ref[...], (((1,), (1,)), ((), ())),
                        preferred_element_type=jnp.float32)
    g = lax.dot_general(xb, wg_ref[...], (((1,), (1,)), ((), ())),
                        preferred_element_type=jnp.float32)
    hidden = (a * _gelu_exact(g)).astype(wd_ref.dtype)     # linear_geglu
    y = lax.dot_general(hidden, wd_ref[...], (((1,), (1,)), ((), ())),
                        preferred_element_type=jnp.float32)
    o_ref[0] = (y + x).astype(o_ref.dtype)


def feed_forward(x, scale, w_up, w_down):
    n, L, D = x.shape
    d_ff = w_up.shape[0] // 2
    tm = _pick_row_tile(L)
    w_a = w_up[:d_ff].astype(MATMUL_DTYPE)         # GEGLU value half
    w_g = w_up[d_ff:].astype(MATMUL_DTYPE)         # GEGLU gate half
    return pl.pallas_call(
        _ff_kernel,
        out_shape=jax.ShapeDtypeStruct((n, L, D), x.dtype),
        grid=(n, L // tm),
        in_specs=[pl.BlockSpec((1, tm, D), lambda i, j: (i, j, 0)),
                  pl.BlockSpec((1, 1, D), lambda i, j: (i, 0, 0)),
                  pl.BlockSpec((d_ff, D), lambda i, j: (0, 0)),
                  pl.BlockSpec((d_ff, D), lambda i, j: (0, 0)),
                  pl.BlockSpec((D, d_ff), lambda i, j: (0, 0))],
        out_specs=pl.BlockSpec((1, tm, D), lambda i, j: (i, j, 0)),
        compiler_params=pltpu.CompilerParams(
            dimension_semantics=("parallel", "parallel")),
    )(x, scale, w_a, w_g, w_down.astype(MATMUL_DTYPE))


# ---------------------------- JAX / host glue ---------------------------------
def window_partition(x, ws):
    n, nh, H, W, e = x.shape
    x = x.reshape(n, nh, H // ws, ws, W // ws, ws, e)
    return jnp.transpose(x, (0, 1, 2, 4, 3, 5, 6))


def window_merge(x):
    n, nh, nhw, nww, wsh, wsw, e = x.shape
    x = jnp.transpose(x, (0, 1, 2, 4, 3, 5, 6))
    return x.reshape(n, nh, nhw * wsh, nww * wsw, e)


def shifted_window_fn(x, ws, shift):
    x = jnp.roll(x, (shift, shift), axis=(-2, -3))
    return window_partition(x, ws)


def shifted_unwindow_fn(x, shift):
    x = window_merge(x)
    return jnp.roll(x, (-shift, -shift), axis=(-2, -3))


def make_window_mask_np(n_h_w, n_w_w, w_h, w_w, shift):
    # Config-static; computed on the host (numpy), never as traced XLA ops.
    ph, pw, qh, qw, kh, kw = np.meshgrid(
        np.arange(n_h_w), np.arange(n_w_w), np.arange(w_h),
        np.arange(w_w), np.arange(w_h), np.arange(w_w), indexing="ij")
    is_top = ph == 0
    is_left = pw == 0
    q_above, k_above = qh < shift, kh < shift
    q_left, k_left = qw < shift, kw < shift
    m_corner = is_left & is_top & (q_left == k_left) & (q_above == k_above)
    m_left = is_left & ~is_top & (q_left == k_left)
    m_top = ~is_left & is_top & (q_above == k_above)
    m_rest = ~is_left & ~is_top
    return m_corner | m_left | m_top | m_rest


def axial_rope_theta(pos, freqs):
    theta_h = pos[..., None, 0:1] * freqs          # (n,H,W,nh,dt/2)
    theta_w = pos[..., None, 1:2] * freqs
    theta = jnp.concatenate([theta_h, theta_w], axis=-1)
    return jnp.moveaxis(theta, -2, -4)             # (n, nh, H, W, dt)


def shifted_window_transformer_layer(x, pos, cond, params, cfg):
    n, H, W, D = x.shape
    nh, e = cfg["n_heads"], cfg["d_head"]
    ws, shift = cfg["window_size"], cfg["window_shift"]
    L = H * W
    nhw, nww = H // ws, W // ws
    nW, S = nhw * nww, ws * ws
    x_flat = x.reshape(n, L, D)

    # ----------------- self-attention block -----------------
    attn_norm_scale = (cond @ params["attn_norm_w"].T + 1.0)[:, None, :]     # (n,1,D)
    qkv = norm_matmul(x_flat, attn_norm_scale, params["wqkv"])               # K1

    qkv = qkv.reshape(n, H, W, 3, nh, e)
    qkv = jnp.transpose(qkv, (3, 0, 4, 1, 2, 5))                             # (3,n,nh,H,W,e)
    q, k, v = qkv[0], qkv[1], qkv[2]

    theta = axial_rope_theta(pos, params["freqs"])                           # (n,nh,H,W,dt)
    dt = theta.shape[-1]

    def to_windows(t):
        tw = shifted_window_fn(t, ws, shift)        # (n, nh, nhw, nww, ws, ws, c)
        return tw.reshape(n * nh, nW, S, t.shape[-1])

    qw, kw, vw = to_windows(q), to_windows(k), to_windows(v)
    thw = to_windows(theta)
    cosw, sinw = jnp.cos(thw), jnp.sin(thw)

    # Static (nW, S, S) bias pattern -- indexed per window block in the kernel,
    # never replicated over n * n_heads.
    mask = make_window_mask_np(nhw, nww, ws, ws, shift).reshape(nW, S, S)
    bias = jnp.asarray(np.where(mask, 0.0, NEG_INF), dtype=jnp.float32)
    sqrt_scale = jnp.sqrt(params["attn_scale"]).astype(jnp.float32)          # (nh,)

    ow = window_attention(sqrt_scale, qw, kw, vw, cosw, sinw, bias,
                          n_heads=nh, dt=dt)                                 # K3 (fused K2)

    o = ow.reshape(n, nh, nhw, nww, ws, ws, e)
    o = shifted_unwindow_fn(o, shift)                                        # (n,nh,H,W,e)
    o = jnp.transpose(o, (0, 2, 3, 1, 4)).reshape(n, L, D)                   # n h w (nh e)
    # TODO(synk): roll / window partition / head transpose stay as XLA data movement;
    # a single fully-fused attention call would need an in-kernel windowed gather.
    x_flat = matmul_residual(o, x_flat, params["wout"])                      # K4

    # -------------------- feed-forward block -----------------
    ff_norm_scale = (cond @ params["ff_norm_w"].T + 1.0)[:, None, :]
    x_flat = feed_forward(x_flat, ff_norm_scale,
                          params["wup"], params["wdown"])                    # K5
    return x_flat.reshape(n, H, W, D)


# -------------------- pure-JAX reference for validation ----------------------
def reference_layer(x, pos, cond, params, cfg):
    n, H, W, D = x.shape
    nh, e = cfg["n_heads"], cfg["d_head"]
    ws, shift, d_ff = cfg["window_size"], cfg["window_shift"], cfg["d_ff"]

    def rms_norm(t, scale):
        mean_sq = jnp.mean(t * t, axis=-1, keepdims=True)
        return t * (scale * lax.rsqrt(mean_sq + EPS))

    skip = x
    scale_a = (cond @ params["attn_norm_w"].T + 1.0)[:, None, None, :]
    xn = rms_norm(x, scale_a)
    qkv = (xn @ params["wqkv"].T).reshape(n, H, W, 3, nh, e)
    q = jnp.moveaxis(qkv[..., 0, :, :], -2, 1)
    k = jnp.moveaxis(qkv[..., 1, :, :], -2, 1)
    v = jnp.moveaxis(qkv[..., 2, :, :], -2, 1)

    s = params["attn_scale"][:, None, None, None]
    sq = jnp.sqrt(s)
    q = q * (sq * lax.rsqrt(jnp.sum(q * q, -1, keepdims=True) + EPS))
    k = k * (sq * lax.rsqrt(jnp.sum(k * k, -1, keepdims=True) + EPS))

    theta = axial_rope_theta(pos, params["freqs"])
    dt = theta.shape[-1]
    cos, sin = jnp.cos(theta), jnp.sin(theta)

    def rope(t):
        t1, t2, rest = t[..., :dt], t[..., dt:2 * dt], t[..., 2 * dt:]
        return jnp.concatenate([t1 * cos - t2 * sin, t2 * cos + t1 * sin, rest], -1)

    q, k = rope(q), rope(k)

    qw = shifted_window_fn(q, ws, shift)
    kw = shifted_window_fn(k, ws, shift)
    vw = shifted_window_fn(v, ws, shift)
    nhw, nww = qw.shape[2], qw.shape[3]
    S = ws * ws
    qs, ks, vs = (t.reshape(n, nh, nhw, nww, S, e) for t in (qw, kw, vw))
    mask = jnp.asarray(make_window_mask_np(nhw, nww, ws, ws, shift)
                       ).reshape(nhw, nww, S, S)
    bias = jnp.where(mask, 0.0, NEG_INF)
    scores = jnp.einsum("bnhwqe,bnhwke->bnhwqk", qs, ks) + bias
    probs = jax.nn.softmax(scores, axis=-1)
    o = jnp.einsum("bnhwqk,bnhwke->bnhwqe", probs, vs)
    o = o.reshape(n, nh, nhw, nww, ws, ws, e)
    o = shifted_unwindow_fn(o, shift)
    o = jnp.moveaxis(o, 1, -2).reshape(n, H, W, D)
    x = o @ params["wout"].T + skip

    skip = x
    scale_f = (cond @ params["ff_norm_w"].T + 1.0)[:, None, None, :]
    xn = rms_norm(x, scale_f)
    h = xn @ params["wup"].T
    a, g = h[..., :d_ff], h[..., d_ff:]
    hidden = a * jax.nn.gelu(g, approximate=False)
    return hidden @ params["wdown"].T + skip


# ------------------------------------------------------------------------------
if __name__ == "__main__":
    d_model, d_head, d_ff, cond_features = 32, 8, 64, 16
    window_size, index = 4, 1
    n_heads = d_model // d_head
    window_shift = window_size // 2 if index % 2 == 1 else 0
    n, H, W = 2, 16, 16

    key = jax.random.PRNGKey(0)
    ks = jax.random.split(key, 8)

    def init(k, shape, std=0.05):
        return (std * jax.random.normal(k, shape)).astype(jnp.float32)

    # AxialRoPE frequencies (deterministic, matches the module formula).
    dim = d_head // 2
    freqs = jnp.exp(jnp.linspace(math.log(math.pi), math.log(10.0 * math.pi),
                                 n_heads * dim // 4 + 1)[:-1])
    freqs = freqs.reshape(dim // 4, n_heads).T.astype(jnp.float32)   # (n_heads, dim//4)

    # NOTE: out_proj / down_proj / AdaRMSNorm linears are zero-initialized in the
    # PyTorch __init__; we use small deterministic random values instead so the
    # kernel path is non-trivial.  attn scale keeps its __init__ value of 10.0.
    params = {
        "attn_norm_w": init(ks[0], (d_model, cond_features), 0.02),
        "wqkv": init(ks[1], (3 * d_model, d_model)),
        "attn_scale": jnp.full((n_heads,), 10.0, jnp.float32),
        "freqs": freqs,
        "wout": init(ks[2], (d_model, d_model)),
        "ff_norm_w": init(ks[3], (d_model, cond_features), 0.02),
        "wup": init(ks[4], (2 * d_ff, d_model)),
        "wdown": init(ks[5], (d_model, d_ff)),
    }

    x = init(ks[6], (n, H, W, d_model), 0.5)
    cond = init(ks[7], (n, cond_features), 1.0)
    hc = jnp.linspace(-1.0, 1.0, H)
    wc = jnp.linspace(-1.0, 1.0, W)
    pos = jnp.stack(jnp.meshgrid(hc, wc, indexing="ij"), axis=-1)
    pos = jnp.broadcast_to(pos[None], (n, H, W, 2)).astype(jnp.float32)

    cfg = dict(n_heads=n_heads, d_head=d_head, window_size=window_size,
               window_shift=window_shift, d_ff=d_ff)

    out = shifted_window_transformer_layer(x, pos, cond, params, cfg)
    out = jax.block_until_ready(out)

    ref = reference_layer(x, pos, cond, params, cfg)
    assert out.shape == (n, H, W, d_model)
    max_err = float(jnp.max(jnp.abs(out - ref)))
    # Tolerance accounts for intentional bf16 MXU inputs in the projection
    # kernels (f32 accumulation) vs the all-f32 reference; observed error is
    # typically ~1e-3.
    assert max_err < 3e-2, f"max abs error vs reference: {max_err}"
    print("KERNEL_OK")
</pallas_src>

<mosaic_0001>
module attributes {stable_mosaic.version = 11 : i64} {
  func.func @_norm_matmul_kernel(%arg0: i32, %arg1: i32, %arg2: memref<1x256x32xf32, #tpu.memory_space<vmem>>, %arg3: memref<1x1x32xf32, #tpu.memory_space<vmem>>, %arg4: memref<96x32xbf16, #tpu.memory_space<vmem>>, %arg5: memref<1x256x96xf32, #tpu.memory_space<vmem>>) attributes {dimension_semantics = [#tpu.dimension_semantics<parallel>, #tpu.dimension_semantics<parallel>], iteration_bounds = array<i64: 2, 1>, scalar_prefetch = 0 : i64, scratch_operands = 0 : i64, tpu.core_type = #tpu.core_type<tc>, window_params = [{transform_indices = @transform_0, window_bounds = array<i64: 1, 256, 32>}, {transform_indices = @transform_1, window_bounds = array<i64: 1, 1, 32>}, {pipeline_mode = #tpu.pipeline_mode<synchronous>, transform_indices = @transform_2, window_bounds = array<i64: 96, 32>}, {transform_indices = @transform_3, window_bounds = array<i64: 1, 256, 96>}]} {
    %c0 = arith.constant 0 : index
    %c0_0 = arith.constant 0 : index
    %c0_1 = arith.constant 0 : index
    %0 = vector.load %arg2[%c0, %c0_0, %c0_1] : memref<1x256x32xf32, #tpu.memory_space<vmem>>, vector<1x256x32xf32>
    %1 = vector.shape_cast %0 : vector<1x256x32xf32> to vector<256x32xf32>
    %c0_2 = arith.constant 0 : index
    %c0_3 = arith.constant 0 : index
    %c0_4 = arith.constant 0 : index
    %2 = vector.load %arg3[%c0_2, %c0_3, %c0_4] : memref<1x1x32xf32, #tpu.memory_space<vmem>>, vector<1x1x32xf32>
    %3 = vector.shape_cast %2 : vector<1x1x32xf32> to vector<1x32xf32>
    %4 = arith.mulf %1, %1 : vector<256x32xf32>
    %cst = arith.constant dense<0.000000e+00> : vector<256xf32>
    %5 = vector.multi_reduction <add>, %4, %cst [1] : vector<256x32xf32> to vector<256xf32>
    %6 = vector.shape_cast %5 : vector<256xf32> to vector<256x1xf32>
    %cst_5 = arith.constant 3.200000e+01 : f32
    %7 = vector.broadcast %cst_5 : f32 to vector<256x1xf32>
    %8 = arith.divf %6, %7 : vector<256x1xf32>
    %cst_6 = arith.constant 9.99999997E-7 : f32
    %9 = vector.broadcast %cst_6 : f32 to vector<256x1xf32>
    %10 = arith.addf %8, %9 : vector<256x1xf32>
    %11 = math.rsqrt %10 : vector<256x1xf32>
    %12 = vector.broadcast %3 : vector<1x32xf32> to vector<256x32xf32>
    %13 = vector.broadcast %11 : vector<256x1xf32> to vector<256x32xf32>
    %14 = arith.mulf %12, %13 : vector<256x32xf32>
    %15 = arith.mulf %1, %14 : vector<256x32xf32>
    %16 = arith.truncf %15 : vector<256x32xf32> to vector<256x32xbf16>
    %c0_7 = arith.constant 0 : index
    %c0_8 = arith.constant 0 : index
    %17 = vector.load %arg4[%c0_7, %c0_8] : memref<96x32xbf16, #tpu.memory_space<vmem>>, vector<96x32xbf16>
    %cst_9 = arith.constant dense<0.000000e+00> : vector<256x96xf32>
    %18 = tpu.matmul %16, %17, %cst_9 {dimension_numbers = #tpu.dot_dimension_numbers<[1], [1], [0], [0], [0, 0, 1, 0], [], []>} : vector<256x32xbf16>, vector<96x32xbf16>, vector<256x96xf32> -> vector<256x96xf32>
    %c0_10 = arith.constant 0 : index
    %c0_11 = arith.constant 0 : index
    %c0_12 = arith.constant 0 : index
    %19 = vector.load %arg5[%c0_10, %c0_11, %c0_12] : memref<1x256x96xf32, #tpu.memory_space<vmem>>, vector<1x256x96xf32>
    %20 = vector.shape_cast %19 : vector<1x256x96xf32> to vector<256x96xf32>
    %21 = vector.shape_cast %18 : vector<256x96xf32> to vector<1x256x96xf32>
    tpu.vector_store %arg5[%c0_10, %c0_11, %c0_12], %21 {strides = array<i32>} : memref<1x256x96xf32, #tpu.memory_space<vmem>>, vector<1x256x96xf32>,
    return
  }
  func.func @transform_0(%arg0: i32, %arg1: i32) -> (i32, i32, i32) {
    %c0_i32 = arith.constant 0 : i32
    %c0_i32_0 = arith.constant 0 : i32
    return %arg0, %arg1, %c0_i32 : i32, i32, i32
  }
  func.func @transform_1(%arg0: i32, %arg1: i32) -> (i32, i32, i32) {
    %c0_i32 = arith.constant 0 : i32
    %c0_i32_0 = arith.constant 0 : i32
    %c0_i32_1 = arith.constant 0 : i32
    return %arg0, %c0_i32, %c0_i32_0 : i32, i32, i32
  }
  func.func @transform_2(%arg0: i32, %arg1: i32) -> (i32, i32) {
    %c0_i32 = arith.constant 0 : i32
    %c0_i32_0 = arith.constant 0 : i32
    %c0_i32_1 = arith.constant 0 : i32
    return %c0_i32, %c0_i32_0 : i32, i32
  }
  func.func @transform_3(%arg0: i32, %arg1: i32) -> (i32, i32, i32) {
    %c0_i32 = arith.constant 0 : i32
    %c0_i32_0 = arith.constant 0 : i32
    return %arg0, %arg1, %c0_i32 : i32, i32, i32
  }
}

</mosaic_0001>

<llo_original>
// kernel: tpu_custom_call.1
$region0: #{tpu_custom_call.1}
  #allocation0 [shape = 'u32[]', space=smem, size = 0x4, offset = 0x4, fixed_abs, tag = 'smem constant byte address 0x4 - core index']
  #allocation1 [shape = 'u32[72,128]{1,0:T(1,128)}', space=vmem, size = 0x9000, scoped, tag = 'internal scratch']
  %s0 = inlined_call_operand.vmem [shape: f32[2,256,32], index: 0, kind: input, shape index: {}]
  %s1 = inlined_call_operand.vmem [shape: f32[2,1,32], index: 1, kind: input, shape index: {}]
  %s2 = inlined_call_operand.vmem [shape: bf16[96,32], index: 2, kind: input, shape index: {}]
  %s3 = inlined_call_operand.vmem [shape: f32[2,256,96], index: 3, kind: output, shape index: {}]
  %s4 = sld [smem:[#allocation0]]
  $region45: #{tpu_custom_call.1} parent=0
    _
  %s6 = ssub.s32 1, %s4
  %s7 = scalar_select 0, %s6, %s4
  loop: start=0, step=1, limit=4
  $region2: #{tpu_custom_call.1} parent=0 // loop_pre_header
    _
  $region3: #{tpu_custom_call.1} parent=0 // loop_header
    %s9 = sphi 0, %s13
    %p10 = scmp.ge.s32.totalorder %s9, 4
    %s16 = sphi 0, %s28
    %s17 = sphi 0, %s24
    %s18 = sphi 0, %s16
    %s19 = sphi 0, %s17
    %s20 = sphi 0, %s18
    %s21 = sphi 0, %s19
    %s33 = sphi 0, %s35
    %s36 = sphi 0, %s33
    %s37 = sphi 0, %s36
    %s53 = sphi 0, %s37
    %s59 = sphi 0, %s61
    %s62 = sphi 0, %s59
    %s63 = sphi 0, %s62
    %s79 = sphi 0, %s63
    %s83 = sphi 0, %s83
    %s85 = sphi 0, %s83
    %s86 = sphi 0, %s85
    %s100 = sphi 0, %s86
    %s108 = sphi 0, %s110
    %s111 = sphi 0, %s108
    %s112 = sphi 0, %s111
    %s128 = sphi 0, %s112
  $region4: #{tpu_custom_call.1} parent=0 // loop_header_branch
    %12 = sbr.rel (%p10) target = $region8
  $region5: #{tpu_custom_call.1} parent=0 // loop_body
    %s14 = ssub.s32 %s9, 1
    %s15 = ssub.s32 %s9, 2
    %s22 = sadd.s32 1, %s17
    %p23 = scmp.ge.s32.totalorder %s22, 1
    %s24 = scalar_select %p23, 0, %s22
    %s25 = sadd.s32 1, %s16
    %s26 = scalar_select %p23, %s25, %s16
    %p27 = scmp.ge.s32.totalorder %s26, 2
    %s28 = scalar_select %p27, 0, %s26
    %s29 = ssub.s32 %s16, %s28
    %s30 = ssub.s32 %s17, %s24
    %s31 = sor.u32 %s29, %s30
    %p32 = scmp.eq.s32.totalorder %s31, 0
    %s34 = sadd.s32 %s33, 1
    %s35 = scalar_select %p32, %s33, %s34
    %p38 = pneg %p32
    %p39 = scmp.eq.s32.totalorder %s9, 1
    %p40 = por %p38, %p39
    %p41 = scmp.ne.s32.totalorder %s33, %s36
    %p42 = scmp.eq.s32.totalorder %s9, 0
    %p43 = por %p41, %p42
    %p44 = scmp.ne.s32.totalorder %s33, %s36
    %p45 = scmp.eq.s32.totalorder %s14, 1
    %p46 = por %p44, %p45
    %p47 = scmp.ne.s32.totalorder %s36, %s37
    %p48 = scmp.eq.s32.totalorder %s14, 0
    %p49 = por %p47, %p48
    %p50 = scmp.ne.s32.totalorder %s36, %s37
    %p51 = scmp.eq.s32.totalorder %s15, 1
    %p52 = por %p50, %p51
    %p54 = scmp.ne.s32.totalorder %s37, %s53
    %p55 = scmp.eq.s32.totalorder %s15, 0
    %p56 = por %p54, %p55
    %s57 = ssub.s32 %s16, %s28
    %p58 = scmp.eq.s32.totalorder %s57, 0
    %s60 = sadd.s32 %s59, 1
    %s61 = scalar_select %p58, %s59, %s60
    %p64 = pneg %p58
    %p65 = scmp.eq.s32.totalorder %s9, 1
    %p66 = por %p64, %p65
    %p67 = scmp.ne.s32.totalorder %s59, %s62
    %p68 = scmp.eq.s32.totalorder %s9, 0
    %p69 = por %p67, %p68
    %p70 = scmp.ne.s32.totalorder %s59, %s62
    %p71 = scmp.eq.s32.totalorder %s14, 1
    %p72 = por %p70, %p71
    %p73 = scmp.ne.s32.totalorder %s62, %s63
    %p74 = scmp.eq.s32.totalorder %s14, 0
    %p75 = por %p73, %p74
    %p76 = scmp.ne.s32.totalorder %s62, %s63
    %p77 = scmp.eq.s32.totalorder %s15, 1
    %p78 = por %p76, %p77
    %p80 = scmp.ne.s32.totalorder %s63, %s79
    %p81 = scmp.eq.s32.totalorder %s15, 0
    %p82 = por %p80, %p81
    %s84 = sadd.s32 %s83, 1
    %p87 = scmp.eq.s32.totalorder %s9, 1
    %p88 = scmp.ne.s32.totalorder %s83, %s85
    %p89 = scmp.eq.s32.totalorder %s9, 0
    %p90 = por %p88, %p89
    %p91 = scmp.ne.s32.totalorder %s83, %s85
    %p92 = scmp.eq.s32.totalorder %s14, 1
    %p93 = por %p91, %p92
    %p94 = scmp.ne.s32.totalorder %s85, %s86
    %p95 = scmp.eq.s32.totalorder %s14, 0
    %p96 = por %p94, %p95
    %p97 = scmp.ne.s32.totalorder %s85, %s86
    %p98 = scmp.eq.s32.totalorder %s15, 1
    %p99 = por %p97, %p98
    %p101 = scmp.ne.s32.totalorder %s86, %s100
    %p102 = scmp.eq.s32.totalorder %s15, 0
    %p103 = por %p101, %p102
    %s104 = ssub.s32 %s16, %s28
    %s105 = ssub.s32 %s17, %s24
    %s106 = sor.u32 %s104, %s105
    %p107 = scmp.eq.s32.totalorder %s106, 0
    %s109 = sadd.s32 %s108, 1
    %s110 = scalar_select %p107, %s108, %s109
    %p113 = pneg %p107
    %p114 = scmp.eq.s32.totalorder %s9, 1
    %p115 = por %p113, %p114
    %p116 = scmp.ne.s32.totalorder %s108, %s111
    %p117 = scmp.eq.s32.totalorder %s9, 0
    %p118 = por %p116, %p117
    %p119 = scmp.ne.s32.totalorder %s108, %s111
    %p120 = scmp.eq.s32.totalorder %s14, 1
    %p121 = por %p119, %p120
    %p122 = scmp.ne.s32.totalorder %s111, %s112
    %p123 = scmp.eq.s32.totalorder %s14, 0
    %p124 = por %p122, %p123
    %p125 = scmp.ne.s32.totalorder %s111, %s112
    %p126 = scmp.eq.s32.totalorder %s15, 1
    %p127 = por %p125, %p126
    %p129 = scmp.ne.s32.totalorder %s112, %s128
    %p130 = scmp.eq.s32.totalorder %s15, 0
    %p131 = por %p129, %p130
    %p132 = scmp.le.s32.totalorder 1, %s9
    %p133 = scmp.lt.s32.totalorder %s9, 3
    %p134 = pnand %p132, %p133
    %p135 = pneg %p134
    // Predicated region
    $region9: #{tpu_custom_call.1} parent=5 // pred_check
      _
    $region10: #{tpu_custom_call.1} parent=5 // pred_check_branch
      %137 = sbr.rel (%p134) target = $region12
    $region11: #{tpu_custom_call.1} parent=5 // pred_region
      %s138 = ssub.s32 %s9, 1
      // Predicated region
      $region13: #{tpu_custom_call.1} parent=11 // pred_check
        %p139 = pneg %p96
      $region14: #{tpu_custom_call.1} parent=11 // pred_check_branch
        %141 = sbr.rel (%p139) target = $region16
      $region15: #{tpu_custom_call.1} parent=11 // pred_region
        _
      $region16: #{tpu_custom_call.1} parent=11 // pred_fallthru
        _
    $region12: #{tpu_custom_call.1} parent=5 // pred_fallthru
      _
    %p142 = scmp.lt.s32.totalorder %s9, 2
    // Predicated region
    $region17: #{tpu_custom_call.1} parent=5 // pred_check
      %p143 = pneg %p142
    $region18: #{tpu_custom_call.1} parent=5 // pred_check_branch
      %145 = sbr.rel (%p143) target = $region20
    $region19: #{tpu_custom_call.1} parent=5 // pred_region
      // Predicated region
      $region21: #{tpu_custom_call.1} parent=19 // pred_check
        %p146 = pneg %p43
      $region22: #{tpu_custom_call.1} parent=19 // pred_check_branch
        %148 = sbr.rel (%p146) target = $region24
      $region23: #{tpu_custom_call.1} parent=19 // pred_region
        %s149 = smul.u32 32, %s17
        %p150 = scmp.lt.s32.totalorder %s16, 1
        %s151 = scalar_select %p150, %s16, 1
        %p152 = scmp.lt.s32.totalorder %s149, 31
        %s153 = scalar_select %p152, %s149, 31
        %s154 = smul.addr %s151, 32
        %s155 = sadd.s32 %s153, %s154
        %s156 = smul.addr %s155, 8
        %s157 = scalar_lea.vmem %s0, %s156
        %s158 = smul.u32 32, %s17
      $region24: #{tpu_custom_call.1} parent=19 // pred_fallthru
        _
      // Predicated region
      $region25: #{tpu_custom_call.1} parent=19 // pred_check
        %p159 = pneg %p69
      $region26: #{tpu_custom_call.1} parent=19 // pred_check_branch
        %161 = sbr.rel (%p159) target = $region28
      $region27: #{tpu_custom_call.1} parent=19 // pred_region
        %p162 = scmp.lt.s32.totalorder %s16, 1
        %s163 = scalar_select %p162, %s16, 1
        %s164 = scalar_lea.vmem %s1, %s163
      $region28: #{tpu_custom_call.1} parent=19 // pred_fallthru
        _
    $region20: #{tpu_custom_call.1} parent=5 // pred_fallthru
      _
    %p165 = scmp.le.s32.totalorder 1, %s9
    %p166 = scmp.lt.s32.totalorder %s9, 3
    %p167 = pnand %p165, %p166
    %p168 = pneg %p167
    // Predicated region
    $region29: #{tpu_custom_call.1} parent=5 // pred_check
      _
    $region30: #{tpu_custom_call.1} parent=5 // pred_check_branch
      %170 = sbr.rel (%p167) target = $region32
    $region31: #{tpu_custom_call.1} parent=5 // pred_region
      %s171 = ssub.s32 %s9, 1
      %s172 = smul.u32 32, %s19
      %p173 = scmp.lt.s32.totalorder %s18, 1
      %s174 = scalar_select %p173, %s18, 1
      %p175 = scmp.lt.s32.totalorder %s172, 31
      %s176 = scalar_select %p175, %s172, 31
      %s177 = smul.addr %s174, 32
      %s178 = sadd.s32 %s176, %s177
      %s179 = smul.addr %s178, 8
      %s180 = scalar_lea.vmem %s0, %s179
      %p181 = pneg %p49
      %p182 = pneg %p46
      %p183 = scmp.lt.s32.totalorder %s18, 1
      %s184 = scalar_select %p183, %s18, 1
      %s185 = scalar_lea.vmem %s1, %s184
      %p186 = pneg %p75
      %p187 = pneg %p72
      %p188 = pneg %p96
      %p189 = pneg %p93
      %p190 = pneg %p124
      %p191 = pneg %p121
      %s192 = smul.u32 32, %s19
      %p193 = scmp.lt.s32.totalorder %s18, 1
      %s194 = scalar_select %p193, %s18, 1
      %p195 = scmp.lt.s32.totalorder %s192, 31
      %s196 = scalar_select %p195, %s192, 31
      %s197 = smul.addr %s194, 32
      %s198 = sadd.s32 %s196, %s197
      %s199 = smul.addr %s198, 8
      %s200 = scalar_lea.vmem %s3, %s199
      %s201 = smul.u32 32, %s19
      %p202 = scmp.lt.s32.totalorder %s18, 1
      %s203 = scalar_select %p202, %s18, 1
      %p204 = scmp.lt.s32.totalorder %s201, 31
      %s205 = scalar_select %p204, %s201, 31
      %s206 = smul.addr %s203, 32
      %s207 = sadd.s32 %s205, %s206
      %s208 = smul.addr %s207, 8
      %s209 = scalar_lea.vmem %s0, %s208
      %s210 = smul.u32 32, %s19
      %p211 = scmp.lt.s32.totalorder %s18, 1
      %s212 = scalar_select %p211, %s18, 1
      %s213 = scalar_lea.vmem %s1, %s212
      %s214 = smul.u32 32, %s19
      %p215 = scmp.lt.s32.totalorder %s18, 1
      %s216 = scalar_select %p215, %s18, 1
      %p217 = scmp.lt.s32.totalorder %s214, 31
      %s218 = scalar_select %p217, %s214, 31
      %s219 = smul.addr %s216, 32
      %s220 = sadd.s32 %s218, %s219
      %s221 = smul.addr %s220, 8
      %s222 = scalar_lea.vmem %s3, %s221
      %s223 = smul.u32 32, %s19
      %v225 = vld [vmem:[%s209] sm:$0xff]
      %v226 = vld [vmem:[%s209 + $0x8] sm:$0xff]
      %v227 = vld [vmem:[%s209 + $0x10] sm:$0xff]
      %v228 = vld [vmem:[%s209 + $0x18] sm:$0xff]
      %v229 = vld [vmem:[%s209 + $0x20] sm:$0xff]
      %v230 = vld [vmem:[%s209 + $0x28] sm:$0xff]
      %v231 = vld [vmem:[%s209 + $0x30] sm:$0xff]
      %v232 = vld [vmem:[%s209 + $0x38] sm:$0xff]
      %v233 = vld [vmem:[%s209 + $0x40] sm:$0xff]
      %v234 = vld [vmem:[%s209 + $0x48] sm:$0xff]
      %v235 = vld [vmem:[%s209 + $0x50] sm:$0xff]
      %v236 = vld [vmem:[%s209 + $0x58] sm:$0xff]
      %v237 = vld [vmem:[%s209 + $0x60] sm:$0xff]
      %v238 = vld [vmem:[%s209 + $0x68] sm:$0xff]
      %v239 = vld [vmem:[%s209 + $0x70] sm:$0xff]
      %v240 = vld [vmem:[%s209 + $0x78] sm:$0xff]
      %v241 = vld [vmem:[%s209 + $0x80] sm:$0xff]
      %v242 = vld [vmem:[%s209 + $0x88] sm:$0xff]
      %v243 = vld [vmem:[%s209 + $0x90] sm:$0xff]
      %v244 = vld [vmem:[%s209 + $0x98] sm:$0xff]
      %v245 = vld [vmem:[%s209 + $0xa0] sm:$0xff]
      %v246 = vld [vmem:[%s209 + $0xa8] sm:$0xff]
      %v247 = vld [vmem:[%s209 + $0xb0] sm:$0xff]
      %v248 = vld [vmem:[%s209 + $0xb8] sm:$0xff]
      %v249 = vld [vmem:[%s209 + $0xc0] sm:$0xff]
      %v250 = vld [vmem:[%s209 + $0xc8] sm:$0xff]
      %v251 = vld [vmem:[%s209 + $0xd0] sm:$0xff]
      %v252 = vld [vmem:[%s209 + $0xd8] sm:$0xff]
      %v253 = vld [vmem:[%s209 + $0xe0] sm:$0xff]
      %v254 = vld [vmem:[%s209 + $0xe8] sm:$0xff]
      %v255 = vld [vmem:[%s209 + $0xf0] sm:$0xff]
      %v256 = vld [vmem:[%s209 + $0xf8] sm:$0xff]
      %v257 = vld [vmem:[%s213] sm:$0x1]
      %v258 = vmul.f32 %v225, %v225
      %v259 = vmul.f32 %v226, %v226
      %v260 = vmul.f32 %v227, %v227
      %v261 = vmul.f32 %v228, %v228
      %v262 = vmul.f32 %v229, %v229
      %v263 = vmul.f32 %v230, %v230
      %v264 = vmul.f32 %v231, %v231
      %v265 = vmul.f32 %v232, %v232
      %v266 = vmul.f32 %v233, %v233
      %v267 = vmul.f32 %v234, %v234
      %v268 = vmul.f32 %v235, %v235
      %v269 = vmul.f32 %v236, %v236
      %v270 = vmul.f32 %v237, %v237
      %v271 = vmul.f32 %v238, %v238
      %v272 = vmul.f32 %v239, %v239
      %v273 = vmul.f32 %v240, %v240
      %v274 = vmul.f32 %v241, %v241
      %v275 = vmul.f32 %v242, %v242
      %v276 = vmul.f32 %v243, %v243
      %v277 = vmul.f32 %v244, %v244
      %v278 = vmul.f32 %v245, %v245
      %v279 = vmul.f32 %v246, %v246
      %v280 = vmul.f32 %v247, %v247
      %v281 = vmul.f32 %v248, %v248
      %v282 = vmul.f32 %v249, %v249
      %v283 = vmul.f32 %v250, %v250
      %v284 = vmul.f32 %v251, %v251
      %v285 = vmul.f32 %v252, %v252
      %v286 = vmul.f32 %v253, %v253
      %v287 = vmul.f32 %v254, %v254
      %v288 = vmul.f32 %v255, %v255
      %v289 = vmul.f32 %v256, %v256
      %vm290 = vcmask 261120
      %v291 = vsel %vm290, %v258, 0.0
      %292 = vadd.xlane.f32.xlu0 %v291
      %v293 = vpop.xlane.xlu0 %292
      %v294 = vsel %vm290, %v259, 0.0
      %295 = vadd.xlane.f32.xlu0 %v294
      %v296 = vpop.xlane.xlu0 %295
      %v297 = vsel %vm290, %v260, 0.0
      %298 = vadd.xlane.f32.xlu0 %v297
      %v299 = vpop.xlane.xlu0 %298
      %v300 = vsel %vm290, %v261, 0.0
      %301 = vadd.xlane.f32.xlu0 %v300
      %v302 = vpop.xlane.xlu0 %301
      %v303 = vsel %vm290, %v262, 0.0
      %304 = vadd.xlane.f32.xlu0 %v303
      %v305 = vpop.xlane.xlu0 %304
      %v306 = vsel %vm290, %v263, 0.0
      %307 = vadd.xlane.f32.xlu0 %v306
      %v308 = vpop.xlane.xlu0 %307
      %v309 = vsel %vm290, %v264, 0.0
      %310 = vadd.xlane.f32.xlu0 %v309
      %v311 = vpop.xlane.xlu0 %310
      %v312 = vsel %vm290, %v265, 0.0
      %313 = vadd.xlane.f32.xlu0 %v312
      %v314 = vpop.xlane.xlu0 %313
      %v315 = vsel %vm290, %v266, 0.0
      %316 = vadd.xlane.f32.xlu0 %v315
      %v317 = vpop.xlane.xlu0 %316
      %v318 = vsel %vm290, %v267, 0.0
      %319 = vadd.xlane.f32.xlu0 %v318
      %v320 = vpop.xlane.xlu0 %319
      %v321 = vsel %vm290, %v268, 0.0
      %322 = vadd.xlane.f32.xlu0 %v321
      %v323 = vpop.xlane.xlu0 %322
      %v324 = vsel %vm290, %v269, 0.0
      %325 = vadd.xlane.f32.xlu0 %v324
      %v326 = vpop.xlane.xlu0 %325
      %v327 = vsel %vm290, %v270, 0.0
      %328 = vadd.xlane.f32.xlu0 %v327
      %v329 = vpop.xlane.xlu0 %328
      %v330 = vsel %vm290, %v271, 0.0
      %331 = vadd.xlane.f32.xlu0 %v330
      %v332 = vpop.xlane.xlu0 %331
      %v333 = vsel %vm290, %v272, 0.0
      %334 = vadd.xlane.f32.xlu0 %v333
      %v335 = vpop.xlane.xlu0 %334
      %v336 = vsel %vm290, %v273, 0.0
      %337 = vadd.xlane.f32.xlu0 %v336
      %v338 = vpop.xlane.xlu0 %337
      %v339 = vsel %vm290, %v274, 0.0
      %340 = vadd.xlane.f32.xlu0 %v339
      %v341 = vpop.xlane.xlu0 %340
      %v342 = vsel %vm290, %v275, 0.0
      %343 = vadd.xlane.f32.xlu0 %v342
      %v344 = vpop.xlane.xlu0 %343
      %v345 = vsel %vm290, %v276, 0.0
      %346 = vadd.xlane.f32.xlu0 %v345
      %v347 = vpop.xlane.xlu0 %346
      %v348 = vsel %vm290, %v277, 0.0
      %349 = vadd.xlane.f32.xlu0 %v348
      %v350 = vpop.xlane.xlu0 %349
      %v351 = vsel %vm290, %v278, 0.0
      %352 = vadd.xlane.f32.xlu0 %v351
      %v353 = vpop.xlane.xlu0 %352
      %v354 = vsel %vm290, %v279, 0.0
      %355 = vadd.xlane.f32.xlu0 %v354
      %v356 = vpop.xlane.xlu0 %355
      %v357 = vsel %vm290, %v280, 0.0
      %358 = vadd.xlane.f32.xlu0 %v357
      %v359 = vpop.xlane.xlu0 %358
      %v360 = vsel %vm290, %v281, 0.0
      %361 = vadd.xlane.f32.xlu0 %v360
      %v362 = vpop.xlane.xlu0 %361
      %v363 = vsel %vm290, %v282, 0.0
      %364 = vadd.xlane.f32.xlu0 %v363
      %v365 = vpop.xlane.xlu0 %364
      %v366 = vsel %vm290, %v283, 0.0
      %367 = vadd.xlane.f32.xlu0 %v366
      %v368 = vpop.xlane.xlu0 %367
      %v369 = vsel %vm290, %v284, 0.0
      %370 = vadd.xlane.f32.xlu0 %v369
      %v371 = vpop.xlane.xlu0 %370
      %v372 = vsel %vm290, %v285, 0.0
      %373 = vadd.xlane.f32.xlu0 %v372
      %v374 = vpop.xlane.xlu0 %373
      %v375 = vsel %vm290, %v286, 0.0
      %376 = vadd.xlane.f32.xlu0 %v375
      %v377 = vpop.xlane.xlu0 %376
      %v378 = vsel %vm290, %v287, 0.0
      %379 = vadd.xlane.f32.xlu0 %v378
      %v380 = vpop.xlane.xlu0 %379
      %v381 = vsel %vm290, %v288, 0.0
      %382 = vadd.xlane.f32.xlu0 %v381
      %v383 = vpop.xlane.xlu0 %382
      %v384 = vsel %vm290, %v289, 0.0
      %385 = vadd.xlane.f32.xlu0 %v384
      %v386 = vpop.xlane.xlu0 %385
      %v387 = vrcp.pop 32.0
      %v388 = vmul.f32 32.0, %v387
      %v389 = vsub.f32 1.0, %v388
      %v390 = vmul.f32 %v387, %v389
      %v391 = vadd.f32 %v387, %v390
      %vm392 = vweird.f32 %v387
      %v393 = vsel %vm392, %v387, %v391
      %v394 = vmul.f32 %v293, %v393
      %v395 = vmul.f32 %v296, %v393
      %v396 = vmul.f32 %v299, %v393
      %v397 = vmul.f32 %v302, %v393
      %v398 = vmul.f32 %v305, %v393
      %v399 = vmul.f32 %v308, %v393
      %v400 = vmul.f32 %v311, %v393
      %v401 = vmul.f32 %v314, %v393
      %v402 = vmul.f32 %v317, %v393
      %v403 = vmul.f32 %v320, %v393
      %v404 = vmul.f32 %v323, %v393
      %v405 = vmul.f32 %v326, %v393
      %v406 = vmul.f32 %v329, %v393
      %v407 = vmul.f32 %v332, %v393
      %v408 = vmul.f32 %v335, %v393
      %v409 = vmul.f32 %v338, %v393
      %v410 = vmul.f32 %v341, %v393
      %v411 = vmul.f32 %v344, %v393
      %v412 = vmul.f32 %v347, %v393
      %v413 = vmul.f32 %v350, %v393
      %v414 = vmul.f32 %v353, %v393
      %v415 = vmul.f32 %v356, %v393
      %v416 = vmul.f32 %v359, %v393
      %v417 = vmul.f32 %v362, %v393
      %v418 = vmul.f32 %v365, %v393
      %v419 = vmul.f32 %v368, %v393
      %v420 = vmul.f32 %v371, %v393
      %v421 = vmul.f32 %v374, %v393
      %v422 = vmul.f32 %v377, %v393
      %v423 = vmul.f32 %v380, %v393
      %v424 = vmul.f32 %v383, %v393
      %v425 = vmul.f32 %v386, %v393
      %v426 = vadd.f32 %v394, 1e-06
      %v427 = vadd.f32 %v395, 1e-06
      %v428 = vadd.f32 %v396, 1e-06
      %v429 = vadd.f32 %v397, 1e-06
      %v430 = vadd.f32 %v398, 1e-06
      %v431 = vadd.f32 %v399, 1e-06
      %v432 = vadd.f32 %v400, 1e-06
      %v433 = vadd.f32 %v401, 1e-06
      %v434 = vadd.f32 %v402, 1e-06
      %v435 = vadd.f32 %v403, 1e-06
      %v436 = vadd.f32 %v404, 1e-06
      %v437 = vadd.f32 %v405, 1e-06
      %v438 = vadd.f32 %v406, 1e-06
      %v439 = vadd.f32 %v407, 1e-06
      %v440 = vadd.f32 %v408, 1e-06
      %v441 = vadd.f32 %v409, 1e-06
      %v442 = vadd.f32 %v410, 1e-06
      %v443 = vadd.f32 %v411, 1e-06
      %v444 = vadd.f32 %v412, 1e-06
      %v445 = vadd.f32 %v413, 1e-06
      %v446 = vadd.f32 %v414, 1e-06
      %v447 = vadd.f32 %v415, 1e-06
      %v448 = vadd.f32 %v416, 1e-06
      %v449 = vadd.f32 %v417, 1e-06
      %v450 = vadd.f32 %v418, 1e-06
      %v451 = vadd.f32 %v419, 1e-06
      %v452 = vadd.f32 %v420, 1e-06
      %v453 = vadd.f32 %v421, 1e-06
      %v454 = vadd.f32 %v422, 1e-06
      %v455 = vadd.f32 %v423, 1e-06
      %v456 = vadd.f32 %v424, 1e-06
      %v457 = vadd.f32 %v425, 1e-06
      %v458 = vrsqrt.pop %v426
      %v459 = vmul.f32 %v458, %v426
      %v460 = vmul.f32 %v459, %v458
      %v461 = vmul.f32 0.5, %v460
      %v462 = vsub.f32 1.5, %v461
      %v463 = vmul.f32 %v458, %v462
      %vm464 = vweird.f32 %v426
      %vm465 = vweird.f32 %v458
      %vm466 = vmor %vm464, %vm465
      %v467 = vsel %vm466, %v458, %v463
      %v468 = vrsqrt.pop %v427
      %v469 = vmul.f32 %v468, %v427
      %v470 = vmul.f32 %v469, %v468
      %v471 = vmul.f32 0.5, %v470
      %v472 = vsub.f32 1.5, %v471
      %v473 = vmul.f32 %v468, %v472
      %vm474 = vweird.f32 %v427
      %vm475 = vweird.f32 %v468
      %vm476 = vmor %vm474, %vm475
      %v477 = vsel %vm476, %v468, %v473
      %v478 = vrsqrt.pop %v428
      %v479 = vmul.f32 %v478, %v428
      %v480 = vmul.f32 %v479, %v478
      %v481 = vmul.f32 0.5, %v480
      %v482 = vsub.f32 1.5, %v481
      %v483 = vmul.f32 %v478, %v482
      %vm484 = vweird.f32 %v428
      %vm485 = vweird.f32 %v478
      %vm486 = vmor %vm484, %vm485
      %v487 = vsel %vm486, %v478, %v483
      %v488 = vrsqrt.pop %v429
      %v489 = vmul.f32 %v488, %v429
      %v490 = vmul.f32 %v489, %v488
      %v491 = vmul.f32 0.5, %v490
      %v492 = vsub.f32 1.5, %v491
      %v493 = vmul.f32 %v488, %v492
      %vm494 = vweird.f32 %v429
      %vm495 = vweird.f32 %v488
      %vm496 = vmor %vm494, %vm495
      %v497 = vsel %vm496, %v488, %v493
      %v498 = vrsqrt.pop %v430
      %v499 = vmul.f32 %v498, %v430
      %v500 = vmul.f32 %v499, %v498
      %v501 = vmul.f32 0.5, %v500
      %v502 = vsub.f32 1.5, %v501
      %v503 = vmul.f32 %v498, %v502
      %vm504 = vweird.f32 %v430
      %vm505 = vweird.f32 %v498
      %vm506 = vmor %vm504, %vm505
      %v507 = vsel %vm506, %v498, %v503
      %v508 = vrsqrt.pop %v431
      %v509 = vmul.f32 %v508, %v431
      %v510 = vmul.f32 %v509, %v508
      %v511 = vmul.f32 0.5, %v510
      %v512 = vsub.f32 1.5, %v511
      %v513 = vmul.f32 %v508, %v512
      %vm514 = vweird.f32 %v431
      %vm515 = vweird.f32 %v508
      %vm516 = vmor %vm514, %vm515
      %v517 = vsel %vm516, %v508, %v513
      %v518 = vrsqrt.pop %v432
      %v519 = vmul.f32 %v518, %v432
      %v520 = vmul.f32 %v519, %v518
      %v521 = vmul.f32 0.5, %v520
      %v522 = vsub.f32 1.5, %v521
      %v523 = vmul.f32 %v518, %v522
      %vm524 = vweird.f32 %v432
      %vm525 = vweird.f32 %v518
      %vm526 = vmor %vm524, %vm525
      %v527 = vsel %vm526, %v518, %v523
      %v528 = vrsqrt.pop %v433
      %v529 = vmul.f32 %v528, %v433
      %v530 = vmul.f32 %v529, %v528
      %v531 = vmul.f32 0.5, %v530
      %v532 = vsub.f32 1.5, %v531
      %v533 = vmul.f32 %v528, %v532
      %vm534 = vweird.f32 %v433
      %vm535 = vweird.f32 %v528
      %vm536 = vmor %vm534, %vm535
      %v537 = vsel %vm536, %v528, %v533
      %v538 = vrsqrt.pop %v434
      %v539 = vmul.f32 %v538, %v434
      %v540 = vmul.f32 %v539, %v538
      %v541 = vmul.f32 0.5, %v540
      %v542 = vsub.f32 1.5, %v541
      %v543 = vmul.f32 %v538, %v542
      %vm544 = vweird.f32 %v434
      %vm545 = vweird.f32 %v538
      %vm546 = vmor %vm544, %vm545
      %v547 = vsel %vm546, %v538, %v543
      %v548 = vrsqrt.pop %v435
      %v549 = vmul.f32 %v548, %v435
      %v550 = vmul.f32 %v549, %v548
      %v551 = vmul.f32 0.5, %v550
      %v552 = vsub.f32 1.5, %v551
      %v553 = vmul.f32 %v548, %v552
      %vm554 = vweird.f32 %v435
      %vm555 = vweird.f32 %v548
      %vm556 = vmor %vm554, %vm555
      %v557 = vsel %vm556, %v548, %v553
      %v558 = vrsqrt.pop %v436
      %v559 = vmul.f32 %v558, %v436
      %v560 = vmul.f32 %v559, %v558
      %v561 = vmul.f32 0.5, %v560
      %v562 = vsub.f32 1.5, %v561
      %v563 = vmul.f32 %v558, %v562
      %vm564 = vweird.f32 %v436
      %vm565 = vweird.f32 %v558
      %vm566 = vmor %vm564, %vm565
      %v567 = vsel %vm566, %v558, %v563
      %v568 = vrsqrt.pop %v437
      %v569 = vmul.f32 %v568, %v437
      %v570 = vmul.f32 %v569, %v568
      %v571 = vmul.f32 0.5, %v570
      %v572 = vsub.f32 1.5, %v571
      %v573 = vmul.f32 %v568, %v572
      %vm574 = vweird.f32 %v437
      %vm575 = vweird.f32 %v568
      %vm576 = vmor %vm574, %vm575
      %v577 = vsel %vm576, %v568, %v573
      %v578 = vrsqrt.pop %v438
      %v579 = vmul.f32 %v578, %v438
      %v580 = vmul.f32 %v579, %v578
      %v581 = vmul.f32 0.5, %v580
      %v582 = vsub.f32 1.5, %v581
      %v583 = vmul.f32 %v578, %v582
      %vm584 = vweird.f32 %v438
      %vm585 = vweird.f32 %v578
      %vm586 = vmor %vm584, %vm585
      %v587 = vsel %vm586, %v578, %v583
      %v588 = vrsqrt.pop %v439
      %v589 = vmul.f32 %v588, %v439
      %v590 = vmul.f32 %v589, %v588
      %v591 = vmul.f32 0.5, %v590
      %v592 = vsub.f32 1.5, %v591
      %v593 = vmul.f32 %v588, %v592
      %vm594 = vweird.f32 %v439
      %vm595 = vweird.f32 %v588
      %vm596 = vmor %vm594, %vm595
      %v597 = vsel %vm596, %v588, %v593
      %v598 = vrsqrt.pop %v440
      %v599 = vmul.f32 %v598, %v440
      %v600 = vmul.f32 %v599, %v598
      %v601 = vmul.f32 0.5, %v600
      %v602 = vsub.f32 1.5, %v601
      %v603 = vmul.f32 %v598, %v602
      %vm604 = vweird.f32 %v440
      %vm605 = vweird.f32 %v598
      %vm606 = vmor %vm604, %vm605
      %v607 = vsel %vm606, %v598, %v603
      %v608 = vrsqrt.pop %v441
      %v609 = vmul.f32 %v608, %v441
      %v610 = vmul.f32 %v609, %v608
      %v611 = vmul.f32 0.5, %v610
      %v612 = vsub.f32 1.5, %v611
      %v613 = vmul.f32 %v608, %v612
      %vm614 = vweird.f32 %v441
      %vm615 = vweird.f32 %v608
      %vm616 = vmor %vm614, %vm615
      %v617 = vsel %vm616, %v608, %v613
      %v618 = vrsqrt.pop %v442
      %v619 = vmul.f32 %v618, %v442
      %v620 = vmul.f32 %v619, %v618
      %v621 = vmul.f32 0.5, %v620
      %v622 = vsub.f32 1.5, %v621
      %v623 = vmul.f32 %v618, %v622
      %vm624 = vweird.f32 %v442
      %vm625 = vweird.f32 %v618
      %vm626 = vmor %vm624, %vm625
      %v627 = vsel %vm626, %v618, %v623
      %v628 = vrsqrt.pop %v443
      %v629 = vmul.f32 %v628, %v443
      %v630 = vmul.f32 %v629, %v628
      %v631 = vmul.f32 0.5, %v630
      %v632 = vsub.f32 1.5, %v631
      %v633 = vmul.f32 %v628, %v632
      %vm634 = vweird.f32 %v443
      %vm635 = vweird.f32 %v628
      %vm636 = vmor %vm634, %vm635
      %v637 = vsel %vm636, %v628, %v633
      %v638 = vrsqrt.pop %v444
      %v639 = vmul.f32 %v638, %v444
      %v640 = vmul.f32 %v639, %v638
      %v641 = vmul.f32 0.5, %v640
      %v642 = vsub.f32 1.5, %v641
      %v643 = vmul.f32 %v638, %v642
      %vm644 = vweird.f32 %v444
      %vm645 = vweird.f32 %v638
      %vm646 = vmor %vm644, %vm645
      %v647 = vsel %vm646, %v638, %v643
      %v648 = vrsqrt.pop %v445
      %v649 = vmul.f32 %v648, %v445
      %v650 = vmul.f32 %v649, %v648
      %v651 = vmul.f32 0.5, %v650
      %v652 = vsub.f32 1.5, %v651
      %v653 = vmul.f32 %v648, %v652
      %vm654 = vweird.f32 %v445
      %vm655 = vweird.f32 %v648
      %vm656 = vmor %vm654, %vm655
      %v657 = vsel %vm656, %v648, %v653
      %v658 = vrsqrt.pop %v446
      %v659 = vmul.f32 %v658, %v446
      %v660 = vmul.f32 %v659, %v658
      %v661 = vmul.f32 0.5, %v660
      %v662 = vsub.f32 1.5, %v661
      %v663 = vmul.f32 %v658, %v662
      %vm664 = vweird.f32 %v446
      %vm665 = vweird.f32 %v658
      %vm666 = vmor %vm664, %vm665
      %v667 = vsel %vm666, %v658, %v663
      %v668 = vrsqrt.pop %v447
      %v669 = vmul.f32 %v668, %v447
      %v670 = vmul.f32 %v669, %v668
      %v671 = vmul.f32 0.5, %v670
      %v672 = vsub.f32 1.5, %v671
      %v673 = vmul.f32 %v668, %v672
      %vm674 = vweird.f32 %v447
      %vm675 = vweird.f32 %v668
      %vm676 = vmor %vm674, %vm675
      %v677 = vsel %vm676, %v668, %v673
      %v678 = vrsqrt.pop %v448
      %v679 = vmul.f32 %v678, %v448
      %v680 = vmul.f32 %v679, %v678
      %v681 = vmul.f32 0.5, %v680
      %v682 = vsub.f32 1.5, %v681
      %v683 = vmul.f32 %v678, %v682
      %vm684 = vweird.f32 %v448
      %vm685 = vweird.f32 %v678
      %vm686 = vmor %vm684, %vm685
      %v687 = vsel %vm686, %v678, %v683
      %v688 = vrsqrt.pop %v449
      %v689 = vmul.f32 %v688, %v449
      %v690 = vmul.f32 %v689, %v688
      %v691 = vmul.f32 0.5, %v690
      %v692 = vsub.f32 1.5, %v691
      %v693 = vmul.f32 %v688, %v692
      %vm694 = vweird.f32 %v449
      %vm695 = vweird.f32 %v688
      %vm696 = vmor %vm694, %vm695
      %v697 = vsel %vm696, %v688, %v693
      %v698 = vrsqrt.pop %v450
      %v699 = vmul.f32 %v698, %v450
      %v700 = vmul.f32 %v699, %v698
      %v701 = vmul.f32 0.5, %v700
      %v702 = vsub.f32 1.5, %v701
      %v703 = vmul.f32 %v698, %v702
      %vm704 = vweird.f32 %v450
      %vm705 = vweird.f32 %v698
      %vm706 = vmor %vm704, %vm705
      %v707 = vsel %vm706, %v698, %v703
      %v708 = vrsqrt.pop %v451
      %v709 = vmul.f32 %v708, %v451
      %v710 = vmul.f32 %v709, %v708
      %v711 = vmul.f32 0.5, %v710
      %v712 = vsub.f32 1.5, %v711
      %v713 = vmul.f32 %v708, %v712
      %vm714 = vweird.f32 %v451
      %vm715 = vweird.f32 %v708
      %vm716 = vmor %vm714, %vm715
      %v717 = vsel %vm716, %v708, %v713
      %v718 = vrsqrt.pop %v452
      %v719 = vmul.f32 %v718, %v452
      %v720 = vmul.f32 %v719, %v718
      %v721 = vmul.f32 0.5, %v720
      %v722 = vsub.f32 1.5, %v721
      %v723 = vmul.f32 %v718, %v722
      %vm724 = vweird.f32 %v452
      %vm725 = vweird.f32 %v718
      %vm726 = vmor %vm724, %vm725
      %v727 = vsel %vm726, %v718, %v723
      %v728 = vrsqrt.pop %v453
      %v729 = vmul.f32 %v728, %v453
      %v730 = vmul.f32 %v729, %v728
      %v731 = vmul.f32 0.5, %v730
      %v732 = vsub.f32 1.5, %v731
      %v733 = vmul.f32 %v728, %v732
      %vm734 = vweird.f32 %v453
      %vm735 = vweird.f32 %v728
      %vm736 = vmor %vm734, %vm735
      %v737 = vsel %vm736, %v728, %v733
      %v738 = vrsqrt.pop %v454
      %v739 = vmul.f32 %v738, %v454
      %v740 = vmul.f32 %v739, %v738
      %v741 = vmul.f32 0.5, %v740
      %v742 = vsub.f32 1.5, %v741
      %v743 = vmul.f32 %v738, %v742
      %vm744 = vweird.f32 %v454
      %vm745 = vweird.f32 %v738
      %vm746 = vmor %vm744, %vm745
      %v747 = vsel %vm746, %v738, %v743
      %v748 = vrsqrt.pop %v455
      %v749 = vmul.f32 %v748, %v455
      %v750 = vmul.f32 %v749, %v748
      %v751 = vmul.f32 0.5, %v750
      %v752 = vsub.f32 1.5, %v751
      %v753 = vmul.f32 %v748, %v752
      %vm754 = vweird.f32 %v455
      %vm755 = vweird.f32 %v748
      %vm756 = vmor %vm754, %vm755
      %v757 = vsel %vm756, %v748, %v753
      %v758 = vrsqrt.pop %v456
      %v759 = vmul.f32 %v758, %v456
      %v760 = vmul.f32 %v759, %v758
      %v761 = vmul.f32 0.5, %v760
      %v762 = vsub.f32 1.5, %v761
      %v763 = vmul.f32 %v758, %v762
      %vm764 = vweird.f32 %v456
      %vm765 = vweird.f32 %v758
      %vm766 = vmor %vm764, %vm765
      %v767 = vsel %vm766, %v758, %v763
      %v768 = vrsqrt.pop %v457
      %v769 = vmul.f32 %v768, %v457
      %v770 = vmul.f32 %v769, %v768
      %v771 = vmul.f32 0.5, %v770
      %v772 = vsub.f32 1.5, %v771
      %v773 = vmul.f32 %v768, %v772
      %vm774 = vweird.f32 %v457
      %vm775 = vweird.f32 %v768
      %vm776 = vmor %vm774, %vm775
      %v777 = vsel %vm776, %v768, %v773
      %v779 = vperm.slane %v257, 0
      %v781 = vmul.f32 %v779, %v467
      %v782 = vmul.f32 %v779, %v477
      %v783 = vmul.f32 %v779, %v487
      %v784 = vmul.f32 %v779, %v497
      %v785 = vmul.f32 %v779, %v507
      %v786 = vmul.f32 %v779, %v517
      %v787 = vmul.f32 %v779, %v527
      %v788 = vmul.f32 %v779, %v537
      %v789 = vmul.f32 %v779, %v547
      %v790 = vmul.f32 %v779, %v557
      %v791 = vmul.f32 %v779, %v567
      %v792 = vmul.f32 %v779, %v577
      %v793 = vmul.f32 %v779, %v587
      %v794 = vmul.f32 %v779, %v597
      %v795 = vmul.f32 %v779, %v607
      %v796 = vmul.f32 %v779, %v617
      %v797 = vmul.f32 %v779, %v627
      %v798 = vmul.f32 %v779, %v637
      %v799 = vmul.f32 %v779, %v647
      %v800 = vmul.f32 %v779, %v657
      %v801 = vmul.f32 %v779, %v667
      %v802 = vmul.f32 %v779, %v677
      %v803 = vmul.f32 %v779, %v687
      %v804 = vmul.f32 %v779, %v697
      %v805 = vmul.f32 %v779, %v707
      %v806 = vmul.f32 %v779, %v717
      %v807 = vmul.f32 %v779, %v727
      %v808 = vmul.f32 %v779, %v737
      %v809 = vmul.f32 %v779, %v747
      %v810 = vmul.f32 %v779, %v757
      %v811 = vmul.f32 %v779, %v767
      %v812 = vmul.f32 %v779, %v777
      %v813 = vmul.f32 %v225, %v781
      %v814 = vmul.f32 %v226, %v782
      %v815 = vmul.f32 %v227, %v783
      %v816 = vmul.f32 %v228, %v784
      %v817 = vmul.f32 %v229, %v785
      %v818 = vmul.f32 %v230, %v786
      %v819 = vmul.f32 %v231, %v787
      %v820 = vmul.f32 %v232, %v788
      %v821 = vmul.f32 %v233, %v789
      %v822 = vmul.f32 %v234, %v790
      %v823 = vmul.f32 %v235, %v791
      %v824 = vmul.f32 %v236, %v792
      %v825 = vmul.f32 %v237, %v793
      %v826 = vmul.f32 %v238, %v794
      %v827 = vmul.f32 %v239, %v795
      %v828 = vmul.f32 %v240, %v796
      %v829 = vmul.f32 %v241, %v797
      %v830 = vmul.f32 %v242, %v798
      %v831 = vmul.f32 %v243, %v799
      %v832 = vmul.f32 %v244, %v800
      %v833 = vmul.f32 %v245, %v801
      %v834 = vmul.f32 %v246, %v802
      %v835 = vmul.f32 %v247, %v803
      %v836 = vmul.f32 %v248, %v804
      %v837 = vmul.f32 %v249, %v805
      %v838 = vmul.f32 %v250, %v806
      %v839 = vmul.f32 %v251, %v807
      %v840 = vmul.f32 %v252, %v808
      %v841 = vmul.f32 %v253, %v809
      %v842 = vmul.f32 %v254, %v810
      %v843 = vmul.f32 %v255, %v811
      %v844 = vmul.f32 %v256, %v812
      %v845 = vpack.c.bf16 %v814, %v813
      %v846 = vpack.c.bf16 %v816, %v815
      %v847 = vpack.c.bf16 %v818, %v817
      %v848 = vpack.c.bf16 %v820, %v819
      %v849 = vpack.c.bf16 %v822, %v821
      %v850 = vpack.c.bf16 %v824, %v823
      %v851 = vpack.c.bf16 %v826, %v825
      %v852 = vpack.c.bf16 %v828, %v827
      %v853 = vpack.c.bf16 %v830, %v829
      %v854 = vpack.c.bf16 %v832, %v831
      %v855 = vpack.c.bf16 %v834, %v833
      %v856 = vpack.c.bf16 %v836, %v835
      %v857 = vpack.c.bf16 %v838, %v837
      %v858 = vpack.c.bf16 %v840, %v839
      %v859 = vpack.c.bf16 %v842, %v841
      %v860 = vpack.c.bf16 %v844, %v843
      %v861 = vld [vmem:[%s2] sm:$0xf]
      %v862 = vld [vmem:[%s2 + $0x4] sm:$0xf]
      %v863 = vld [vmem:[%s2 + $0x8] sm:$0xf]
      %v864 = vld [vmem:[%s2 + $0xc] sm:$0xf]
      %v865 = vld [vmem:[%s2 + $0x10] sm:$0xf]
      %v866 = vld [vmem:[%s2 + $0x14] sm:$0xf]
      %v867 = vld [vmem:[%s2 + $0x18] sm:$0xf]
      %v868 = vld [vmem:[%s2 + $0x1c] sm:$0xf]
      %v869 = vld [vmem:[%s2 + $0x20] sm:$0xf]
      %v870 = vld [vmem:[%s2 + $0x24] sm:$0xf]
      %v871 = vld [vmem:[%s2 + $0x28] sm:$0xf]
      %v872 = vld [vmem:[%s2 + $0x2c] sm:$0xf]
      %v885 = vunpack.c.l.b16 %v861
      %v886 = vunpack.c.l.b16 %v862
      %v887 = vunpack.c.l.b16 %v863
      %v888 = vunpack.c.l.b16 %v864
      %v889 = vunpack.c.l.b16 %v865
      %v890 = vunpack.c.l.b16 %v866
      %v891 = vunpack.c.l.b16 %v867
      %v892 = vunpack.c.l.b16 %v868
      %v893 = vunpack.c.l.b16 %v869
      %v894 = vunpack.c.l.b16 %v870
      %v895 = vunpack.c.l.b16 %v871
      %v896 = vunpack.c.l.b16 %v872
      %v897 = vpack.c.b16 %v886, %v885
      %v898 = vpack.c.b16 %v888, %v887
      %v899 = vpack.c.b16 %v890, %v889
      %v900 = vpack.c.b16 %v892, %v891
      %v901 = vpack.c.b16 %v894, %v893
      %v902 = vpack.c.b16 %v896, %v895
      %v904 = vsel %vm290, %v845, 0
      %v907 = vsel %vm290, %v846, 0
      %v910 = vsel %vm290, %v847, 0
      %v913 = vsel %vm290, %v848, 0
      %v916 = vsel %vm290, %v849, 0
      %v919 = vsel %vm290, %v850, 0
      %v922 = vsel %vm290, %v851, 0
      %v925 = vsel %vm290, %v852, 0
      %v928 = vsel %vm290, %v853, 0
      %v931 = vsel %vm290, %v854, 0
      %v934 = vsel %vm290, %v855, 0
      %v937 = vsel %vm290, %v856, 0
      %v940 = vsel %vm290, %v857, 0
      %v943 = vsel %vm290, %v858, 0
      %v946 = vsel %vm290, %v859, 0
      %v949 = vsel %vm290, %v860, 0
      %v952 = vsel %vm290, %v897, 0
      %v955 = vsel %vm290, %v898, 0
      %v958 = vsel %vm290, %v899, 0
      %v961 = vsel %vm290, %v900, 0
      %v964 = vsel %vm290, %v901, 0
      %v967 = vsel %vm290, %v902, 0
      %969 = vmatpush.bf16.xpose.msra.mxu0 0
      %970 = vmatpush.bf16.xpose.msra.mxu0 0
      %971 = vmatpush.bf16.xpose.msra.mxu0 %v967
      %972 = vmatpush.bf16.xpose.msra.mxu0 %v964
      %973 = vmatpush.bf16.xpose.msra.mxu0 %v961
      %974 = vmatpush.bf16.xpose.msra.mxu0 %v958
      %975 = vmatpush.bf16.xpose.msra.mxu0 %v955
      %976 = vmatpush.bf16.xpose.msra.mxu0 %v952
      %977 = vmatmul.bf16.gmra.mxu0 %v904
      %v978 = vpop.f32.mrf.mxu0
      %v979 = vadd.f32 0.0, %v978
      %v980 = vpop.f32.mrf.mxu0
      %v981 = vadd.f32 0.0, %v980
      %982 = vmatmul.bf16.gmra.mxu0 %v907
      %v983 = vpop.f32.mrf.mxu0
      %v984 = vadd.f32 0.0, %v983
      %v985 = vpop.f32.mrf.mxu0
      %v986 = vadd.f32 0.0, %v985
      %987 = vmatmul.bf16.gmra.mxu0 %v910
      %v988 = vpop.f32.mrf.mxu0
      %v989 = vadd.f32 0.0, %v988
      %v990 = vpop.f32.mrf.mxu0
      %v991 = vadd.f32 0.0, %v990
      %992 = vmatmul.bf16.gmra.mxu0 %v913
      %v993 = vpop.f32.mrf.mxu0
      %v994 = vadd.f32 0.0, %v993
      %v995 = vpop.f32.mrf.mxu0
      %v996 = vadd.f32 0.0, %v995
      %997 = vmatmul.bf16.gmra.mxu0 %v916
      %v998 = vpop.f32.mrf.mxu0
      %v999 = vadd.f32 0.0, %v998
      %v1000 = vpop.f32.mrf.mxu0
      %v1001 = vadd.f32 0.0, %v1000
      %1002 = vmatmul.bf16.gmra.mxu0 %v919
      %v1003 = vpop.f32.mrf.mxu0
      %v1004 = vadd.f32 0.0, %v1003
      %v1005 = vpop.f32.mrf.mxu0
      %v1006 = vadd.f32 0.0, %v1005
      %1007 = vmatmul.bf16.gmra.mxu0 %v922
      %v1008 = vpop.f32.mrf.mxu0
      %v1009 = vadd.f32 0.0, %v1008
      %v1010 = vpop.f32.mrf.mxu0
      %v1011 = vadd.f32 0.0, %v1010
      %1012 = vmatmul.bf16.gmra.mxu0 %v925
      %v1013 = vpop.f32.mrf.mxu0
      %v1014 = vadd.f32 0.0, %v1013
      %v1015 = vpop.f32.mrf.mxu0
      %v1016 = vadd.f32 0.0, %v1015
      %1017 = vmatmul.bf16.gmra.mxu0 %v928
      %v1018 = vpop.f32.mrf.mxu0
      %v1019 = vadd.f32 0.0, %v1018
      %v1020 = vpop.f32.mrf.mxu0
      %v1021 = vadd.f32 0.0, %v1020
      %1022 = vmatmul.bf16.gmra.mxu0 %v931
      %v1023 = vpop.f32.mrf.mxu0
      %v1024 = vadd.f32 0.0, %v1023
      %v1025 = vpop.f32.mrf.mxu0
      %v1026 = vadd.f32 0.0, %v1025
      %1027 = vmatmul.bf16.gmra.mxu0 %v934
      %v1028 = vpop.f32.mrf.mxu0
      %v1029 = vadd.f32 0.0, %v1028
      %v1030 = vpop.f32.mrf.mxu0
      %v1031 = vadd.f32 0.0, %v1030
      %1032 = vmatmul.bf16.gmra.mxu0 %v937
      %v1033 = vpop.f32.mrf.mxu0
      %v1034 = vadd.f32 0.0, %v1033
      %v1035 = vpop.f32.mrf.mxu0
      %v1036 = vadd.f32 0.0, %v1035
      %1037 = vmatmul.bf16.gmra.mxu0 %v940
      %v1038 = vpop.f32.mrf.mxu0
      %v1039 = vadd.f32 0.0, %v1038
      %v1040 = vpop.f32.mrf.mxu0
      %v1041 = vadd.f32 0.0, %v1040
      %1042 = vmatmul.bf16.gmra.mxu0 %v943
      %v1043 = vpop.f32.mrf.mxu0
      %v1044 = vadd.f32 0.0, %v1043
      %v1045 = vpop.f32.mrf.mxu0
      %v1046 = vadd.f32 0.0, %v1045
      %1047 = vmatmul.bf16.gmra.mxu0 %v946
      %v1048 = vpop.f32.mrf.mxu0
      %v1049 = vadd.f32 0.0, %v1048
      %v1050 = vpop.f32.mrf.mxu0
      %v1051 = vadd.f32 0.0, %v1050
      %1052 = vmatmul.bf16.gmra.mxu0 %v949
      %v1053 = vpop.f32.mrf.mxu0
      %v1054 = vadd.f32 0.0, %v1053
      %v1055 = vpop.f32.mrf.mxu0
      %v1056 = vadd.f32 0.0, %v1055
      %1057 = vdwg.mxu0
      %vm1058 = vcmask 785408
      %1059 = vst.msk [vmem:[%s222] sm:$0xff] %vm1058, %v979
      %1060 = vst.msk [vmem:[%s222 + $0x8] sm:$0xff] %vm1058, %v981
      %1061 = vst.msk [vmem:[%s222 + $0x10] sm:$0xff] %vm1058, %v984
      %1062 = vst.msk [vmem:[%s222 + $0x18] sm:$0xff] %vm1058, %v986
      %1063 = vst.msk [vmem:[%s222 + $0x20] sm:$0xff] %vm1058, %v989
      %1064 = vst.msk [vmem:[%s222 + $0x28] sm:$0xff] %vm1058, %v991
      %1065 = vst.msk [vmem:[%s222 + $0x30] sm:$0xff] %vm1058, %v994
      %1066 = vst.msk [vmem:[%s222 + $0x38] sm:$0xff] %vm1058, %v996
      %1067 = vst.msk [vmem:[%s222 + $0x40] sm:$0xff] %vm1058, %v999
      %1068 = vst.msk [vmem:[%s222 + $0x48] sm:$0xff] %vm1058, %v1001
      %1069 = vst.msk [vmem:[%s222 + $0x50] sm:$0xff] %vm1058, %v1004
      %1070 = vst.msk [vmem:[%s222 + $0x58] sm:$0xff] %vm1058, %v1006
      %1071 = vst.msk [vmem:[%s222 + $0x60] sm:$0xff] %vm1058, %v1009
      %1072 = vst.msk [vmem:[%s222 + $0x68] sm:$0xff] %vm1058, %v1011
      %1073 = vst.msk [vmem:[%s222 + $0x70] sm:$0xff] %vm1058, %v1014
      %1074 = vst.msk [vmem:[%s222 + $0x78] sm:$0xff] %vm1058, %v1016
      %1075 = vst.msk [vmem:[%s222 + $0x80] sm:$0xff] %vm1058, %v1019
      %1076 = vst.msk [vmem:[%s222 + $0x88] sm:$0xff] %vm1058, %v1021
      %1077 = vst.msk [vmem:[%s222 + $0x90] sm:$0xff] %vm1058, %v1024
      %1078 = vst.msk [vmem:[%s222 + $0x98] sm:$0xff] %vm1058, %v1026
      %1079 = vst.msk [vmem:[%s222 + $0xa0] sm:$0xff] %vm1058, %v1029
      %1080 = vst.msk [vmem:[%s222 + $0xa8] sm:$0xff] %vm1058, %v1031
      %1081 = vst.msk [vmem:[%s222 + $0xb0] sm:$0xff] %vm1058, %v1034
      %1082 = vst.msk [vmem:[%s222 + $0xb8] sm:$0xff] %vm1058, %v1036
      %1083 = vst.msk [vmem:[%s222 + $0xc0] sm:$0xff] %vm1058, %v1039
      %1084 = vst.msk [vmem:[%s222 + $0xc8] sm:$0xff] %vm1058, %v1041
      %1085 = vst.msk [vmem:[%s222 + $0xd0] sm:$0xff] %vm1058, %v1044
      %1086 = vst.msk [vmem:[%s222 + $0xd8] sm:$0xff] %vm1058, %v1046
      %1087 = vst.msk [vmem:[%s222 + $0xe0] sm:$0xff] %vm1058, %v1049
      %1088 = vst.msk [vmem:[%s222 + $0xe8] sm:$0xff] %vm1058, %v1051
      %1089 = vst.msk [vmem:[%s222 + $0xf0] sm:$0xff] %vm1058, %v1054
      %1090 = vst.msk [vmem:[%s222 + $0xf8] sm:$0xff] %vm1058, %v1056
      %s1091 = smul.u32 32, %s19
      %p1092 = scmp.lt.s32.totalorder %s18, 1
      %s1093 = scalar_select %p1092, %s18, 1
      %p1094 = scmp.lt.s32.totalorder %s1091, 31
      %s1095 = scalar_select %p1094, %s1091, 31
      %s1096 = smul.addr %s1093, 32
      %s1097 = sadd.s32 %s1095, %s1096
      %s1098 = smul.addr %s1097, 8
      %s1099 = scalar_lea.vmem %s3, %s1098
      // Predicated region
      $region33: #{tpu_custom_call.1} parent=31 // pred_check
        %p1100 = pneg %p121
      $region34: #{tpu_custom_call.1} parent=31 // pred_check_branch
        %1102 = sbr.rel (%p1100) target = $region36
      $region35: #{tpu_custom_call.1} parent=31 // pred_region
        %s1103 = smul.u32 32, %s19
      $region36: #{tpu_custom_call.1} parent=31 // pred_fallthru
        _
    $region32: #{tpu_custom_call.1} parent=5 // pred_fallthru
      _
    %p1104 = scmp.le.s32.totalorder 2, %s9
    // Predicated region
    $region37: #{tpu_custom_call.1} parent=5 // pred_check
      %p1105 = pneg %p1104
    $region38: #{tpu_custom_call.1} parent=5 // pred_check_branch
      %1107 = sbr.rel (%p1105) target = $region40
    $region39: #{tpu_custom_call.1} parent=5 // pred_region
      %s1108 = ssub.s32 %s9, 2
      // Predicated region
      $region41: #{tpu_custom_call.1} parent=39 // pred_check
        %p1109 = pneg %p127
      $region42: #{tpu_custom_call.1} parent=39 // pred_check_branch
        %1111 = sbr.rel (%p1109) target = $region44
      $region43: #{tpu_custom_call.1} parent=39 // pred_region
        %s1112 = smul.u32 32, %s21
        %p1113 = scmp.lt.s32.totalorder %s20, 1
        %s1114 = scalar_select %p1113, %s20, 1
        %p1115 = scmp.lt.s32.totalorder %s1112, 31
        %s1116 = scalar_select %p1115, %s1112, 31
        %s1117 = smul.addr %s1114, 32
        %s1118 = sadd.s32 %s1116, %s1117
        %s1119 = smul.addr %s1118, 8
        %s1120 = scalar_lea.vmem %s3, %s1119
      $region44: #{tpu_custom_call.1} parent=39 // pred_fallthru
        _
    $region40: #{tpu_custom_call.1} parent=5 // pred_fallthru
      _
  $region6: #{tpu_custom_call.1} parent=0 // loop_footer
    %s13 = sadd.s32 1, %s9
  $region7: #{tpu_custom_call.1} parent=0 // loop_footer_branch
    %8 = sbr.rel target = $region3
  $region8: #{tpu_custom_call.1} parent=0 // loop_exit
    _

</llo_original>
